<compile_context>
chip_gen: v7x
topology: tpu7x:2x2x1
jax: 0.10.0
libtpu: 0.0.40
codegen_flags: <defaults>
</compile_context>

<pallas_src>
import numpy as np
import jax
import jax.numpy as jnp
from jax.experimental import pallas as pl
from jax.experimental.pallas import tpu as pltpu


# ---------------------------------------------------------------------------
# Backward kernel: dx = -coeff * g, coeff read from SMEM at runtime
# ---------------------------------------------------------------------------

def _reverse_scale_kernel(g_ref, coeff_ref, o_ref):
    # coeff lives in SMEM as a (1,) f32 array -> no recompile when it changes.
    scale = -coeff_ref[0]
    # Multiply in f32 and cast back so low-precision grads keep the scale.
    o_ref[...] = (g_ref[...].astype(jnp.float32) * scale).astype(o_ref.dtype)


_LANE_CANDIDATES = (8192, 4096, 2048, 1024, 512, 256, 128)
_SMALL_BYPASS_BYTES = 256 * 1024        # below this, kernel dispatch dominates


def _target_block_bytes():
    # v5e: 16 MiB default scoped VMEM -> 2 MiB blocks (in+out double-buffered
    # = 8 MiB).  v6e / v7x: 32 MiB scoped default -> 4 MiB blocks (= 16 MiB).
    try:
        kind = jax.devices()[0].device_kind.lower()
    except Exception:
        return 2 * 1024 * 1024
    if "v5" in kind:
        return 2 * 1024 * 1024
    return 4 * 1024 * 1024


def _reverse_scale(g, coeff):
    """dx = -coeff * g via a lane-dense tiled Pallas kernel."""
    orig_shape, dtype = g.shape, g.dtype
    n = int(np.prod(orig_shape))
    nbytes = n * dtype.itemsize
    coeff = jnp.asarray(coeff, jnp.float32)

    # Tiny tensors: launch overhead dwarfs the work; let XLA fuse it.
    if nbytes < _SMALL_BYPASS_BYTES:
        return (-coeff * g.astype(jnp.float32)).astype(dtype).reshape(orig_shape)

    # Widest lane-dense width that divides n -> no pad / slice round trips.
    width = next((w for w in _LANE_CANDIDATES if n % w == 0), None)
    if width is None:
        # TODO(synk): handle ragged element counts with a masked tail store
        # inside the kernel instead of falling back to plain XLA.
        return (-coeff * g.astype(jnp.float32)).astype(dtype).reshape(orig_shape)

    rows = n // width
    g2d = g.reshape(rows, width)

    # Rows per block: multiple of 8 sublanes, block <= target bytes per buffer.
    block_bytes = _target_block_bytes()
    rows_per_block = max(8, (block_bytes // (width * dtype.itemsize)) // 8 * 8)
    rows_per_block = min(rows, rows_per_block)
    # Ensure >= 2 balanced grid steps whenever possible so both v7x
    # TensorCores engage (per-TC DMA bandwidth is the limiter).
    if rows >= 16:
        half_rows = ((pl.cdiv(rows, 2) + 7) // 8) * 8
        rows_per_block = min(rows_per_block, half_rows)
    grid = (pl.cdiv(rows, rows_per_block),)

    coeff_smem = coeff.reshape(1)

    out2d = pl.pallas_call(
        _reverse_scale_kernel,
        out_shape=jax.ShapeDtypeStruct((rows, width), dtype),
        grid=grid,
        in_specs=[
            pl.BlockSpec((rows_per_block, width), lambda i: (i, 0)),
            pl.BlockSpec(memory_space=pltpu.MemorySpace.SMEM),
        ],
        out_specs=pl.BlockSpec((rows_per_block, width), lambda i: (i, 0)),
        # Donate the gradient buffer: same bytes moved, one less HBM allocation.
        input_output_aliases={0: 0},
        compiler_params=pltpu.CompilerParams(
            dimension_semantics=("parallel",)),
    )(g2d, coeff_smem)

    return out2d.reshape(orig_shape)


# ---------------------------------------------------------------------------
# GRL with custom VJP (forward identity, backward -coeff * g)
# ---------------------------------------------------------------------------

def grl_coeff(iter_num, alpha=10.0, low=0.0, high=1.0, max_iter=100.0):
    """coeff schedule from the PyTorch module; works with traced iter_num."""
    it = jnp.asarray(iter_num, jnp.float32)
    return (2.0 * (high - low) / (1.0 + jnp.exp(-alpha * it / max_iter))
            - (high - low) + low)


@jax.custom_vjp
def _grl_core(x, coeff):
    # Forward semantics of the module (`input * 1.0`) == identity.
    # True no-op: no kernel launch, no HBM traffic.
    return x


def _grl_core_fwd(x, coeff):
    return x, coeff


def _grl_core_bwd(coeff, g):
    dx = _reverse_scale(g, coeff)           # Pallas: dx = -coeff * g
    return dx, jnp.zeros_like(coeff)


_grl_core.defvjp(_grl_core_fwd, _grl_core_bwd)


def grl(x, iter_num=0):
    """Gradient Reversal Layer: y = x; dL/dx = -coeff(iter_num) * dL/dy."""
    return _grl_core(x, grl_coeff(iter_num))


# ---------------------------------------------------------------------------
# Demo / self-test
# ---------------------------------------------------------------------------

if __name__ == "__main__":
    key = jax.random.PRNGKey(0)
    kx, kg, kx2, kg2 = jax.random.split(key, 4)

    iter_num = 50                               # non-zero so coeff != 0
    coeff = float(grl_coeff(iter_num))

    # --- Spec shape (NCHW 2,4,16,16): forward no-op + small-tensor bwd path ---
    x = jax.random.normal(kx, (2, 4, 16, 16), dtype=jnp.float32)
    y = jax.block_until_ready(grl(x, iter_num))
    assert y.shape == x.shape and y.dtype == x.dtype
    np.testing.assert_array_equal(np.asarray(y), np.asarray(x))

    g = jax.random.normal(kg, x.shape, dtype=jnp.float32)
    _, vjp_fn = jax.vjp(lambda v: grl(v, iter_num), x)
    (dx,) = jax.block_until_ready(vjp_fn(g))
    np.testing.assert_allclose(np.asarray(dx), -coeff * np.asarray(g),
                               rtol=1e-5, atol=1e-6)

    # --- Larger input so the Pallas backward kernel actually runs ---
    x2 = jax.random.normal(kx2, (4, 8, 64, 64), dtype=jnp.float32)   # 512 KiB
    g2 = jax.random.normal(kg2, x2.shape, dtype=jnp.float32)
    _, vjp_fn2 = jax.vjp(lambda v: grl(v, iter_num), x2)
    (dx2,) = jax.block_until_ready(vjp_fn2(g2))
    np.testing.assert_allclose(np.asarray(dx2), -coeff * np.asarray(g2),
                               rtol=1e-5, atol=1e-6)

    # --- iter_num as a traced value under jit: no per-step retrace, no error ---
    grad_fn = jax.jit(jax.grad(lambda v, it: jnp.sum(grl(v, it))))
    dx3 = jax.block_until_ready(grad_fn(x2, jnp.int32(iter_num)))
    np.testing.assert_allclose(np.asarray(dx3),
                               np.full(x2.shape, -coeff, dtype=np.float32),
                               rtol=1e-5, atol=1e-6)

    print("KERNEL_OK")
</pallas_src>

<mosaic_0001>
module attributes {stable_mosaic.version = 11 : i64} {
  func.func @_reverse_scale_kernel(%arg0: i32, %arg1: memref<8x8192xf32, #tpu.memory_space<vmem>>, %arg2: memref<1xf32, #tpu.memory_space<smem>>, %arg3: memref<8x8192xf32, #tpu.memory_space<vmem>>) attributes {dimension_semantics = [#tpu.dimension_semantics<parallel>], iteration_bounds = array<i64: 2>, scalar_prefetch = 0 : i64, scratch_operands = 0 : i64, tpu.core_type = #tpu.core_type<tc>, window_params = [{transform_indices = @transform_0, window_bounds = array<i64: 8, 8192>}, {transform_indices = @transform_1, window_bounds = array<i64: 1>}, {transform_indices = @transform_2, window_bounds = array<i64: 8, 8192>}]} {
    %c0 = arith.constant 0 : index
    %0 = memref.load %arg2[%c0] : memref<1xf32, #tpu.memory_space<smem>>
    %cst = arith.constant 0.000000e+00 : f32
    %1 = arith.subf %cst, %0 : f32
    %c0_0 = arith.constant 0 : index
    %c0_1 = arith.constant 0 : index
    %2 = vector.load %arg1[%c0_0, %c0_1] : memref<8x8192xf32, #tpu.memory_space<vmem>>, vector<8x8192xf32>
    %3 = vector.broadcast %1 : f32 to vector<8x8192xf32>
    %4 = arith.mulf %2, %3 : vector<8x8192xf32>
    %c0_2 = arith.constant 0 : index
    %c0_3 = arith.constant 0 : index
    %5 = vector.load %arg3[%c0_2, %c0_3] : memref<8x8192xf32, #tpu.memory_space<vmem>>, vector<8x8192xf32>
    tpu.vector_store %arg3[%c0_2, %c0_3], %4 {strides = array<i32>} : memref<8x8192xf32, #tpu.memory_space<vmem>>, vector<8x8192xf32>,
    return
  }
  func.func @transform_0(%arg0: i32) -> (i32, i32) {
    %c0_i32 = arith.constant 0 : i32
    %c0_i32_0 = arith.constant 0 : i32
    return %arg0, %c0_i32 : i32, i32
  }
  func.func @transform_1(%arg0: i32) -> i32 {
    %c0_i32 = arith.constant 0 : i32
    %c0_i32_0 = arith.constant 0 : i32
    return %c0_i32 : i32
  }
  func.func @transform_2(%arg0: i32) -> (i32, i32) {
    %c0_i32 = arith.constant 0 : i32
    %c0_i32_0 = arith.constant 0 : i32
    return %arg0, %c0_i32 : i32, i32
  }
}

</mosaic_0001>

<llo_original>
// kernel: tpu_custom_call.1
$region0: #{tpu_custom_call.1}
  #allocation0 [shape = 'u32[]', space=smem, size = 0x4, offset = 0x4, fixed_abs, tag = 'smem constant byte address 0x4 - core index']
  #allocation1 [shape = 'u32[144,128]{1,0:T(1,128)}', space=vmem, size = 0x12000, scoped, tag = 'internal scratch']
  #allocation2 [shape = 'f32[1]{0:T(128)S(6)}', space=smem, size = 0x200, scoped, tag = 'scoped memory for tpu_custom_call.1']
  %s0 = inlined_call_operand.hbm [shape: f32[16,8192], index: 0, kind: input, shape index: {}, may-alias: {0,2}]
  %s1 = inlined_call_operand.<no memory space> [shape: f32[1], index: 1, kind: input, shape index: {}]
  %s2 = inlined_call_operand.hbm [shape: f32[16,8192], index: 2, kind: output, shape index: {}, may-alias: {0,2}]
  %s3 = sld [smem:[#allocation0]]
  $region45: #{tpu_custom_call.1} parent=0
    _
  %s5 = ssub.s32 1, %s3
  %s6 = scalar_select 0, %s5, %s3
  %7 = sst [smem:[#allocation2]] %s1
  $region1: #{tpu_custom_call.1} parent=0
    #allocation3 [shape = 'u8[524288]{0}', space=vmem, size = 0x80000, scoped, tag = 'input window, operand 0']
    #allocation4 [shape = 's32[2]{0}', space=sflag, size = 0x8, scoped, tag = 'scoped memory for tpu_custom_call.1']
    #allocation5 [shape = 's32[2]{0}', space=sflag, size = 0x8, scoped, tag = 'scoped memory for tpu_custom_call.1']
    #allocation6 [shape = 'u8[524288]{0}', space=vmem, size = 0x80000, scoped, tag = 'output window, operand 0']
    %8 = vsyncpa [#allocation4], 0
    %s9 = scalar_lea.sflag [#allocation4], 1
    %10 = vsyncpa %s9, 0
    %11 = vsyncpa [#allocation5], 0
    %s12 = scalar_lea.sflag [#allocation5], 1
    %13 = vsyncpa %s12, 0
    loop: start=0, step=1, limit=4
    $region2: #{tpu_custom_call.1} parent=1 // loop_pre_header
      _
    $region3: #{tpu_custom_call.1} parent=1 // loop_header
      %s15 = sphi 0, %s19
      %p16 = scmp.ge.s32.totalorder %s15, 4
      %s25 = sphi 0, %s27
      %s28 = sphi 0, %s25
      %s29 = sphi 0, %s28
      %s45 = sphi 0, %s29
      %s49 = sphi 0, %s49
      %s51 = sphi 0, %s49
      %s52 = sphi 0, %s51
      %s66 = sphi 0, %s52
      %s72 = sphi 0, %s74
      %s75 = sphi 0, %s72
      %s76 = sphi 0, %s75
      %s92 = sphi 0, %s76
    $region4: #{tpu_custom_call.1} parent=1 // loop_header_branch
      %18 = sbr.rel (%p16) target = $region8
    $region5: #{tpu_custom_call.1} parent=1 // loop_body
      %s20 = ssub.s32 %s15, 1
      %s21 = ssub.s32 %s15, 2
      %s22 = sadd.s32 %s15, 1
      %s23 = ssub.s32 %s15, %s22
      %p24 = scmp.eq.s32.totalorder %s23, 0
      %s26 = sadd.s32 %s25, 1
      %s27 = scalar_select %p24, %s25, %s26
      %p30 = pneg %p24
      %p31 = scmp.eq.s32.totalorder %s15, 1
      %p32 = por %p30, %p31
      %p33 = scmp.ne.s32.totalorder %s25, %s28
      %p34 = scmp.eq.s32.totalorder %s15, 0
      %p35 = por %p33, %p34
      %p36 = scmp.ne.s32.totalorder %s25, %s28
      %p37 = scmp.eq.s32.totalorder %s20, 1
      %p38 = por %p36, %p37
      %p39 = scmp.ne.s32.totalorder %s28, %s29
      %p40 = scmp.eq.s32.totalorder %s20, 0
      %p41 = por %p39, %p40
      %p42 = scmp.ne.s32.totalorder %s28, %s29
      %p43 = scmp.eq.s32.totalorder %s21, 1
      %p44 = por %p42, %p43
      %p46 = scmp.ne.s32.totalorder %s29, %s45
      %p47 = scmp.eq.s32.totalorder %s21, 0
      %p48 = por %p46, %p47
      %s50 = sadd.s32 %s49, 1
      %p53 = scmp.eq.s32.totalorder %s15, 1
      %p54 = scmp.ne.s32.totalorder %s49, %s51
      %p55 = scmp.eq.s32.totalorder %s15, 0
      %p56 = por %p54, %p55
      %p57 = scmp.ne.s32.totalorder %s49, %s51
      %p58 = scmp.eq.s32.totalorder %s20, 1
      %p59 = por %p57, %p58
      %p60 = scmp.ne.s32.totalorder %s51, %s52
      %p61 = scmp.eq.s32.totalorder %s20, 0
      %p62 = por %p60, %p61
      %p63 = scmp.ne.s32.totalorder %s51, %s52
      %p64 = scmp.eq.s32.totalorder %s21, 1
      %p65 = por %p63, %p64
      %p67 = scmp.ne.s32.totalorder %s52, %s66
      %p68 = scmp.eq.s32.totalorder %s21, 0
      %p69 = por %p67, %p68
      %s70 = ssub.s32 %s15, %s22
      %p71 = scmp.eq.s32.totalorder %s70, 0
      %s73 = sadd.s32 %s72, 1
      %s74 = scalar_select %p71, %s72, %s73
      %p77 = pneg %p71
      %p78 = scmp.eq.s32.totalorder %s15, 1
      %p79 = por %p77, %p78
      %p80 = scmp.ne.s32.totalorder %s72, %s75
      %p81 = scmp.eq.s32.totalorder %s15, 0
      %p82 = por %p80, %p81
      %p83 = scmp.ne.s32.totalorder %s72, %s75
      %p84 = scmp.eq.s32.totalorder %s20, 1
      %p85 = por %p83, %p84
      %p86 = scmp.ne.s32.totalorder %s75, %s76
      %p87 = scmp.eq.s32.totalorder %s20, 0
      %p88 = por %p86, %p87
      %p89 = scmp.ne.s32.totalorder %s75, %s76
      %p90 = scmp.eq.s32.totalorder %s21, 1
      %p91 = por %p89, %p90
      %p93 = scmp.ne.s32.totalorder %s76, %s92
      %p94 = scmp.eq.s32.totalorder %s21, 0
      %p95 = por %p93, %p94
      %p96 = scmp.le.s32.totalorder 1, %s15
      %p97 = scmp.lt.s32.totalorder %s15, 3
      %p98 = pnand %p96, %p97
      %p99 = pneg %p98
      // Predicated region
      $region9: #{tpu_custom_call.1} parent=5 // pred_check
        _
      $region10: #{tpu_custom_call.1} parent=5 // pred_check_branch
        %101 = sbr.rel (%p98) target = $region12
      $region11: #{tpu_custom_call.1} parent=5 // pred_region
        %s102 = ssub.s32 %s15, 1
        // Predicated region
        $region13: #{tpu_custom_call.1} parent=11 // pred_check
          %p103 = pneg %p62
        $region14: #{tpu_custom_call.1} parent=11 // pred_check_branch
          %105 = sbr.rel (%p103) target = $region16
        $region15: #{tpu_custom_call.1} parent=11 // pred_region
          _
        $region16: #{tpu_custom_call.1} parent=11 // pred_fallthru
          _
      $region12: #{tpu_custom_call.1} parent=5 // pred_fallthru
        _
      %p106 = scmp.lt.s32.totalorder %s15, 2
      // Predicated region
      $region17: #{tpu_custom_call.1} parent=5 // pred_check
        %p107 = pneg %p106
      $region18: #{tpu_custom_call.1} parent=5 // pred_check_branch
        %109 = sbr.rel (%p107) target = $region20
      $region19: #{tpu_custom_call.1} parent=5 // pred_region
        // Predicated region
        $region21: #{tpu_custom_call.1} parent=19 // pred_check
          %p110 = pneg %p35
        $region22: #{tpu_custom_call.1} parent=19 // pred_check_branch
          %112 = sbr.rel (%p110) target = $region24
        $region23: #{tpu_custom_call.1} parent=19 // pred_region
          %s113 = sand.u32 %s25, 1
          %s114 = scalar_lea.sflag [#allocation4], %s113
          %s115 = sand.u32 %s25, 1
          %s116 = smul.addr %s115, 512
          %s117 = scalar_lea.vmem [#allocation3], %s116
          %s119 = ssub.s32 8192, 8192
          %120 = vsyncadd %s114, %s119
          %s121 = smul.addr %s15, 64
          %s122 = smul.addr %s121, 128
          %s123 = scalar_lea.hbm %s0, %s122
          %s125 = sshll.u32 %s117, 4
          %s126 = int_to_ptr.vmem [resolvable:$true] %s125
          %128 = dma.hbm_to_vmem [thread:$0]  %s123, 8192, %s126, %s114
        $region24: #{tpu_custom_call.1} parent=19 // pred_fallthru
          _
      $region20: #{tpu_custom_call.1} parent=5 // pred_fallthru
        _
      %p129 = scmp.le.s32.totalorder 1, %s15
      %p130 = scmp.lt.s32.totalorder %s15, 3
      %p131 = pnand %p129, %p130
      %p132 = pneg %p131
      // Predicated region
      $region25: #{tpu_custom_call.1} parent=5 // pred_check
        _
      $region26: #{tpu_custom_call.1} parent=5 // pred_check_branch
        %134 = sbr.rel (%p131) target = $region28
      $region27: #{tpu_custom_call.1} parent=5 // pred_region
        %s135 = ssub.s32 %s15, 1
        %s136 = sand.u32 %s28, 1
        %s137 = scalar_lea.sflag [#allocation4], %s136
        %s138 = sand.u32 %s28, 1
        %s139 = smul.addr %s138, 512
        %s140 = scalar_lea.vmem [#allocation3], %s139
        // Predicated region
        $region29: #{tpu_custom_call.1} parent=27 // pred_check
          %p141 = pneg %p41
        $region30: #{tpu_custom_call.1} parent=27 // pred_check_branch
          %143 = sbr.rel (%p141) target = $region32
        $region31: #{tpu_custom_call.1} parent=27 // pred_region
          %144 = dma.done %s137, 8192
        $region32: #{tpu_custom_call.1} parent=27 // pred_fallthru
          _
        %s145 = sand.u32 %s28, 1
        %s146 = scalar_lea.sflag [#allocation4], %s145
        %s147 = sand.u32 %s28, 1
        %s148 = smul.addr %s147, 512
        %s149 = scalar_lea.vmem [#allocation3], %s148
        %p150 = pneg %p41
        %p151 = pneg %p38
        %p152 = pneg %p62
        %p153 = pneg %p59
        %p154 = pneg %p88
        %p155 = pneg %p85
        %s156 = sand.u32 %s75, 1
        %s157 = scalar_lea.sflag [#allocation5], %s156
        %s158 = sand.u32 %s75, 1
        %s159 = smul.addr %s158, 512
        %s160 = scalar_lea.vmem [#allocation6], %s159
        %s161 = sld [smem:[#allocation2]]
        %s162 = ssub.f32 0.0, %s161
        %v163 = vld [vmem:[%s140] sm:$0xff]
        %v164 = vld [vmem:[%s140 + $0x8] sm:$0xff]
        %v165 = vld [vmem:[%s140 + $0x10] sm:$0xff]
        %v166 = vld [vmem:[%s140 + $0x18] sm:$0xff]
        %v167 = vld [vmem:[%s140 + $0x20] sm:$0xff]
        %v168 = vld [vmem:[%s140 + $0x28] sm:$0xff]
        %v169 = vld [vmem:[%s140 + $0x30] sm:$0xff]
        %v170 = vld [vmem:[%s140 + $0x38] sm:$0xff]
        %v171 = vld [vmem:[%s140 + $0x40] sm:$0xff]
        %v172 = vld [vmem:[%s140 + $0x48] sm:$0xff]
        %v173 = vld [vmem:[%s140 + $0x50] sm:$0xff]
        %v174 = vld [vmem:[%s140 + $0x58] sm:$0xff]
        %v175 = vld [vmem:[%s140 + $0x60] sm:$0xff]
        %v176 = vld [vmem:[%s140 + $0x68] sm:$0xff]
        %v177 = vld [vmem:[%s140 + $0x70] sm:$0xff]
        %v178 = vld [vmem:[%s140 + $0x78] sm:$0xff]
        %v179 = vld [vmem:[%s140 + $0x80] sm:$0xff]
        %v180 = vld [vmem:[%s140 + $0x88] sm:$0xff]
        %v181 = vld [vmem:[%s140 + $0x90] sm:$0xff]
        %v182 = vld [vmem:[%s140 + $0x98] sm:$0xff]
        %v183 = vld [vmem:[%s140 + $0xa0] sm:$0xff]
        %v184 = vld [vmem:[%s140 + $0xa8] sm:$0xff]
        %v185 = vld [vmem:[%s140 + $0xb0] sm:$0xff]
        %v186 = vld [vmem:[%s140 + $0xb8] sm:$0xff]
        %v187 = vld [vmem:[%s140 + $0xc0] sm:$0xff]
        %v188 = vld [vmem:[%s140 + $0xc8] sm:$0xff]
        %v189 = vld [vmem:[%s140 + $0xd0] sm:$0xff]
        %v190 = vld [vmem:[%s140 + $0xd8] sm:$0xff]
        %v191 = vld [vmem:[%s140 + $0xe0] sm:$0xff]
        %v192 = vld [vmem:[%s140 + $0xe8] sm:$0xff]
        %v193 = vld [vmem:[%s140 + $0xf0] sm:$0xff]
        %v194 = vld [vmem:[%s140 + $0xf8] sm:$0xff]
        %v195 = vld [vmem:[%s140 + $0x100] sm:$0xff]
        %v196 = vld [vmem:[%s140 + $0x108] sm:$0xff]
        %v197 = vld [vmem:[%s140 + $0x110] sm:$0xff]
        %v198 = vld [vmem:[%s140 + $0x118] sm:$0xff]
        %v199 = vld [vmem:[%s140 + $0x120] sm:$0xff]
        %v200 = vld [vmem:[%s140 + $0x128] sm:$0xff]
        %v201 = vld [vmem:[%s140 + $0x130] sm:$0xff]
        %v202 = vld [vmem:[%s140 + $0x138] sm:$0xff]
        %v203 = vld [vmem:[%s140 + $0x140] sm:$0xff]
        %v204 = vld [vmem:[%s140 + $0x148] sm:$0xff]
        %v205 = vld [vmem:[%s140 + $0x150] sm:$0xff]
        %v206 = vld [vmem:[%s140 + $0x158] sm:$0xff]
        %v207 = vld [vmem:[%s140 + $0x160] sm:$0xff]
        %v208 = vld [vmem:[%s140 + $0x168] sm:$0xff]
        %v209 = vld [vmem:[%s140 + $0x170] sm:$0xff]
        %v210 = vld [vmem:[%s140 + $0x178] sm:$0xff]
        %v211 = vld [vmem:[%s140 + $0x180] sm:$0xff]
        %v212 = vld [vmem:[%s140 + $0x188] sm:$0xff]
        %v213 = vld [vmem:[%s140 + $0x190] sm:$0xff]
        %v214 = vld [vmem:[%s140 + $0x198] sm:$0xff]
        %v215 = vld [vmem:[%s140 + $0x1a0] sm:$0xff]
        %v216 = vld [vmem:[%s140 + $0x1a8] sm:$0xff]
        %v217 = vld [vmem:[%s140 + $0x1b0] sm:$0xff]
        %v218 = vld [vmem:[%s140 + $0x1b8] sm:$0xff]
        %v219 = vld [vmem:[%s140 + $0x1c0] sm:$0xff]
        %v220 = vld [vmem:[%s140 + $0x1c8] sm:$0xff]
        %v221 = vld [vmem:[%s140 + $0x1d0] sm:$0xff]
        %v222 = vld [vmem:[%s140 + $0x1d8] sm:$0xff]
        %v223 = vld [vmem:[%s140 + $0x1e0] sm:$0xff]
        %v224 = vld [vmem:[%s140 + $0x1e8] sm:$0xff]
        %v225 = vld [vmem:[%s140 + $0x1f0] sm:$0xff]
        %v226 = vld [vmem:[%s140 + $0x1f8] sm:$0xff]
        %v227 = vstv %s162
        %v228 = vmul.f32 %v163, %v227
        %v229 = vmul.f32 %v164, %v227
        %v230 = vmul.f32 %v165, %v227
        %v231 = vmul.f32 %v166, %v227
        %v232 = vmul.f32 %v167, %v227
        %v233 = vmul.f32 %v168, %v227
        %v234 = vmul.f32 %v169, %v227
        %v235 = vmul.f32 %v170, %v227
        %v236 = vmul.f32 %v171, %v227
        %v237 = vmul.f32 %v172, %v227
        %v238 = vmul.f32 %v173, %v227
        %v239 = vmul.f32 %v174, %v227
        %v240 = vmul.f32 %v175, %v227
        %v241 = vmul.f32 %v176, %v227
        %v242 = vmul.f32 %v177, %v227
        %v243 = vmul.f32 %v178, %v227
        %v244 = vmul.f32 %v179, %v227
        %v245 = vmul.f32 %v180, %v227
        %v246 = vmul.f32 %v181, %v227
        %v247 = vmul.f32 %v182, %v227
        %v248 = vmul.f32 %v183, %v227
        %v249 = vmul.f32 %v184, %v227
        %v250 = vmul.f32 %v185, %v227
        %v251 = vmul.f32 %v186, %v227
        %v252 = vmul.f32 %v187, %v227
        %v253 = vmul.f32 %v188, %v227
        %v254 = vmul.f32 %v189, %v227
        %v255 = vmul.f32 %v190, %v227
        %v256 = vmul.f32 %v191, %v227
        %v257 = vmul.f32 %v192, %v227
        %v258 = vmul.f32 %v193, %v227
        %v259 = vmul.f32 %v194, %v227
        %v260 = vmul.f32 %v195, %v227
        %v261 = vmul.f32 %v196, %v227
        %v262 = vmul.f32 %v197, %v227
        %v263 = vmul.f32 %v198, %v227
        %v264 = vmul.f32 %v199, %v227
        %v265 = vmul.f32 %v200, %v227
        %v266 = vmul.f32 %v201, %v227
        %v267 = vmul.f32 %v202, %v227
        %v268 = vmul.f32 %v203, %v227
        %v269 = vmul.f32 %v204, %v227
        %v270 = vmul.f32 %v205, %v227
        %v271 = vmul.f32 %v206, %v227
        %v272 = vmul.f32 %v207, %v227
        %v273 = vmul.f32 %v208, %v227
        %v274 = vmul.f32 %v209, %v227
        %v275 = vmul.f32 %v210, %v227
        %v276 = vmul.f32 %v211, %v227
        %v277 = vmul.f32 %v212, %v227
        %v278 = vmul.f32 %v213, %v227
        %v279 = vmul.f32 %v214, %v227
        %v280 = vmul.f32 %v215, %v227
        %v281 = vmul.f32 %v216, %v227
        %v282 = vmul.f32 %v217, %v227
        %v283 = vmul.f32 %v218, %v227
        %v284 = vmul.f32 %v219, %v227
        %v285 = vmul.f32 %v220, %v227
        %v286 = vmul.f32 %v221, %v227
        %v287 = vmul.f32 %v222, %v227
        %v288 = vmul.f32 %v223, %v227
        %v289 = vmul.f32 %v224, %v227
        %v290 = vmul.f32 %v225, %v227
        %v291 = vmul.f32 %v226, %v227
        %292 = vst [vmem:[%s160] sm:$0xff] %v228
        %293 = vst [vmem:[%s160 + $0x8] sm:$0xff] %v229
        %294 = vst [vmem:[%s160 + $0x10] sm:$0xff] %v230
        %295 = vst [vmem:[%s160 + $0x18] sm:$0xff] %v231
        %296 = vst [vmem:[%s160 + $0x20] sm:$0xff] %v232
        %297 = vst [vmem:[%s160 + $0x28] sm:$0xff] %v233
        %298 = vst [vmem:[%s160 + $0x30] sm:$0xff] %v234
        %299 = vst [vmem:[%s160 + $0x38] sm:$0xff] %v235
        %300 = vst [vmem:[%s160 + $0x40] sm:$0xff] %v236
        %301 = vst [vmem:[%s160 + $0x48] sm:$0xff] %v237
        %302 = vst [vmem:[%s160 + $0x50] sm:$0xff] %v238
        %303 = vst [vmem:[%s160 + $0x58] sm:$0xff] %v239
        %304 = vst [vmem:[%s160 + $0x60] sm:$0xff] %v240
        %305 = vst [vmem:[%s160 + $0x68] sm:$0xff] %v241
        %306 = vst [vmem:[%s160 + $0x70] sm:$0xff] %v242
        %307 = vst [vmem:[%s160 + $0x78] sm:$0xff] %v243
        %308 = vst [vmem:[%s160 + $0x80] sm:$0xff] %v244
        %309 = vst [vmem:[%s160 + $0x88] sm:$0xff] %v245
        %310 = vst [vmem:[%s160 + $0x90] sm:$0xff] %v246
        %311 = vst [vmem:[%s160 + $0x98] sm:$0xff] %v247
        %312 = vst [vmem:[%s160 + $0xa0] sm:$0xff] %v248
        %313 = vst [vmem:[%s160 + $0xa8] sm:$0xff] %v249
        %314 = vst [vmem:[%s160 + $0xb0] sm:$0xff] %v250
        %315 = vst [vmem:[%s160 + $0xb8] sm:$0xff] %v251
        %316 = vst [vmem:[%s160 + $0xc0] sm:$0xff] %v252
        %317 = vst [vmem:[%s160 + $0xc8] sm:$0xff] %v253
        %318 = vst [vmem:[%s160 + $0xd0] sm:$0xff] %v254
        %319 = vst [vmem:[%s160 + $0xd8] sm:$0xff] %v255
        %320 = vst [vmem:[%s160 + $0xe0] sm:$0xff] %v256
        %321 = vst [vmem:[%s160 + $0xe8] sm:$0xff] %v257
        %322 = vst [vmem:[%s160 + $0xf0] sm:$0xff] %v258
        %323 = vst [vmem:[%s160 + $0xf8] sm:$0xff] %v259
        %324 = vst [vmem:[%s160 + $0x100] sm:$0xff] %v260
        %325 = vst [vmem:[%s160 + $0x108] sm:$0xff] %v261
        %326 = vst [vmem:[%s160 + $0x110] sm:$0xff] %v262
        %327 = vst [vmem:[%s160 + $0x118] sm:$0xff] %v263
        %328 = vst [vmem:[%s160 + $0x120] sm:$0xff] %v264
        %329 = vst [vmem:[%s160 + $0x128] sm:$0xff] %v265
        %330 = vst [vmem:[%s160 + $0x130] sm:$0xff] %v266
        %331 = vst [vmem:[%s160 + $0x138] sm:$0xff] %v267
        %332 = vst [vmem:[%s160 + $0x140] sm:$0xff] %v268
        %333 = vst [vmem:[%s160 + $0x148] sm:$0xff] %v269
        %334 = vst [vmem:[%s160 + $0x150] sm:$0xff] %v270
        %335 = vst [vmem:[%s160 + $0x158] sm:$0xff] %v271
        %336 = vst [vmem:[%s160 + $0x160] sm:$0xff] %v272
        %337 = vst [vmem:[%s160 + $0x168] sm:$0xff] %v273
        %338 = vst [vmem:[%s160 + $0x170] sm:$0xff] %v274
        %339 = vst [vmem:[%s160 + $0x178] sm:$0xff] %v275
        %340 = vst [vmem:[%s160 + $0x180] sm:$0xff] %v276
        %341 = vst [vmem:[%s160 + $0x188] sm:$0xff] %v277
        %342 = vst [vmem:[%s160 + $0x190] sm:$0xff] %v278
        %343 = vst [vmem:[%s160 + $0x198] sm:$0xff] %v279
        %344 = vst [vmem:[%s160 + $0x1a0] sm:$0xff] %v280
        %345 = vst [vmem:[%s160 + $0x1a8] sm:$0xff] %v281
        %346 = vst [vmem:[%s160 + $0x1b0] sm:$0xff] %v282
        %347 = vst [vmem:[%s160 + $0x1b8] sm:$0xff] %v283
        %348 = vst [vmem:[%s160 + $0x1c0] sm:$0xff] %v284
        %349 = vst [vmem:[%s160 + $0x1c8] sm:$0xff] %v285
        %350 = vst [vmem:[%s160 + $0x1d0] sm:$0xff] %v286
        %351 = vst [vmem:[%s160 + $0x1d8] sm:$0xff] %v287
        %352 = vst [vmem:[%s160 + $0x1e0] sm:$0xff] %v288
        %353 = vst [vmem:[%s160 + $0x1e8] sm:$0xff] %v289
        %354 = vst [vmem:[%s160 + $0x1f0] sm:$0xff] %v290
        %355 = vst [vmem:[%s160 + $0x1f8] sm:$0xff] %v291
        %s356 = sand.u32 %s75, 1
        %s357 = scalar_lea.sflag [#allocation5], %s356
        %s358 = sand.u32 %s75, 1
        %s359 = smul.addr %s358, 512
        %s360 = scalar_lea.vmem [#allocation6], %s359
        // Predicated region
        $region33: #{tpu_custom_call.1} parent=27 // pred_check
          %p361 = pneg %p85
        $region34: #{tpu_custom_call.1} parent=27 // pred_check_branch
          %363 = sbr.rel (%p361) target = $region36
        $region35: #{tpu_custom_call.1} parent=27 // pred_region
          %s365 = ssub.s32 8192, 8192
          %366 = vsyncadd %s357, %s365
          %s367 = smul.addr %s20, 64
          %s368 = smul.addr %s367, 128
          %s369 = scalar_lea.hbm %s2, %s368
          %s371 = sshll.u32 %s360, 4
          %s372 = int_to_ptr.vmem [resolvable:$true] %s371
          %374 = dma.vmem_to_hbm [thread:$0]  %s372, 8192, %s369, %s357
        $region36: #{tpu_custom_call.1} parent=27 // pred_fallthru
          _
      $region28: #{tpu_custom_call.1} parent=5 // pred_fallthru
        _
      %p375 = scmp.le.s32.totalorder 2, %s15
      // Predicated region
      $region37: #{tpu_custom_call.1} parent=5 // pred_check
        %p376 = pneg %p375
      $region38: #{tpu_custom_call.1} parent=5 // pred_check_branch
        %378 = sbr.rel (%p376) target = $region40
      $region39: #{tpu_custom_call.1} parent=5 // pred_region
        %s379 = ssub.s32 %s15, 2
        // Predicated region
        $region41: #{tpu_custom_call.1} parent=39 // pred_check
          %p380 = pneg %p91
        $region42: #{tpu_custom_call.1} parent=39 // pred_check_branch
          %382 = sbr.rel (%p380) target = $region44
        $region43: #{tpu_custom_call.1} parent=39 // pred_region
          %s383 = sand.u32 %s76, 1
          %s384 = scalar_lea.sflag [#allocation5], %s383
          %s385 = sand.u32 %s76, 1
          %s386 = smul.addr %s385, 512
          %s387 = scalar_lea.vmem [#allocation6], %s386
          %388 = dma.done %s384, 8192
        $region44: #{tpu_custom_call.1} parent=39 // pred_fallthru
          _
      $region40: #{tpu_custom_call.1} parent=5 // pred_fallthru
        _
    $region6: #{tpu_custom_call.1} parent=1 // loop_footer
      %s19 = sadd.s32 1, %s15
    $region7: #{tpu_custom_call.1} parent=1 // loop_footer_branch
      %14 = sbr.rel target = $region3
    $region8: #{tpu_custom_call.1} parent=1 // loop_exit
      _
    %389 = vsyncpa [#allocation4], 1
    %s390 = scalar_lea.sflag [#allocation4], 1
    %391 = vsyncpa %s390, 1
    %392 = vsyncpa [#allocation5], 1
    %s393 = scalar_lea.sflag [#allocation5], 1
    %394 = vsyncpa %s393, 1

</llo_original>
